<compile_context>
chip_gen: v7x
topology: tpu7x:2x2x1
jax: 0.10.0
libtpu: 0.0.40
codegen_flags: <defaults>
</compile_context>

<pallas_src>
import jax
import jax.numpy as jnp
from jax import lax
from jax.experimental import pallas as pl
from jax.experimental.pallas import tpu as pltpu

_LANES = 128  # batch lanes per vreg strip


def _planar_flows_kernel(b_ref, wu_ref, zT_ref, uhatT_ref, wT_ref, fzT_ref, ld_ref):
    """Applies every planar flow to one (D, batch_tile) tile, lane-dense."""
    n_flows = uhatT_ref.shape[1]
    batch_tile = zT_ref.shape[1]
    n_strips = batch_tile // _LANES  # static

    # Hoisted per-flow parameters.  Columns are (D, 1) and broadcast across the
    # 128 batch lanes of each strip; b and dot(w, uhat) are SMEM scalars.
    u_cols = [uhatT_ref[:, pl.ds(f, 1)].astype(jnp.float32) for f in range(n_flows)]
    w_cols = [wT_ref[:, pl.ds(f, 1)].astype(jnp.float32) for f in range(n_flows)]
    b_s = [b_ref[f] for f in range(n_flows)]
    wu_s = [wu_ref[f] for f in range(n_flows)]

    def strip_body(s, carry):
        c0 = pl.multiple_of(s * _LANES, _LANES)
        # (D, 128) strip of z: loaded once, kept in vregs across all flows.
        z = zT_ref[:, pl.ds(c0, _LANES)].astype(jnp.float32)
        logdet = jnp.zeros((1, _LANES), jnp.float32)

        # n_flows is small & static -> unrolled flow loop (innermost).
        for f in range(n_flows):
            # zwb = z @ w + b   (sublane reduce over features)
            zwb = jnp.sum(z * w_cols[f], axis=0, keepdims=True) + b_s[f]  # (1, 128)
            t = jnp.tanh(zwb)                                             # (1, 128)
            z = z + u_cols[f] * t                                         # (D, 128)
            # psi @ uhat == (1 - tanh(zwb)^2) * dot(w, uhat)  (scalar hoisted)
            psi_u = (1.0 - t * t) * wu_s[f]                               # (1, 128)
            # TODO(synk): if the bundle dump ever shows EUP saturation, switch
            # to accumulating prod_f |1 + psi_u_f| with a single log per strip.
            logdet = logdet + jnp.log(jnp.abs(1.0 + psi_u) + 1e-8)

        fzT_ref[:, pl.ds(c0, _LANES)] = z.astype(fzT_ref.dtype)
        ld_ref[:, pl.ds(c0, _LANES)] = logdet
        return carry

    # Short, static strip count: unroll for LLO scheduling visibility; each
    # strip's store bounds its live range regardless.
    lax.fori_loop(0, n_strips, strip_body, 0, unroll=True)


def _round_up(x, m):
    return ((x + m - 1) // m) * m


def normalizing_flows_forward(z, u, w, b, *, batch_tile=None):
    """z: (B, D);  u, w: (n_flows, D);  b: (n_flows,).  Returns (f_z, logdet)."""
    B, D = z.shape
    n_flows = u.shape[0]

    # ---- z-independent per-flow math, hoisted out of the kernel -------------
    u32 = u.astype(jnp.float32)
    w32 = w.astype(jnp.float32)
    uw = jnp.sum(u32 * w32, axis=-1, keepdims=True)                     # (F, 1)
    muw = -1.0 + jax.nn.softplus(uw)
    uhat = u32 + (muw - uw) * w32 / jnp.sum(w32 * w32, axis=-1, keepdims=True)
    wu = jnp.sum(w32 * uhat, axis=-1)                                   # (F,)
    b32 = b.astype(jnp.float32).reshape(n_flows)

    uhatT = jnp.transpose(uhat)                                         # (D, F)
    wT = jnp.transpose(w32)                                             # (D, F)

    # ---- tile selection (batch lanes) ----------------------------------------
    # Lanes carry batch -> tile must be a multiple of 128 regardless of dtype
    # (features live on sublanes and use the full array dim D, so no
    # dtype-dependent sublane rounding is needed).
    if batch_tile is None:
        # Aim for >= 8 grid steps on large batches (megacore sharding + room
        # for double-buffered prefetch/writeback), cap at 512 lanes.
        target = _round_up(pl.cdiv(B, 8), _LANES)
        # VMEM-aware cap: double-buffered z + fz tiles ~ 4 * TB * D * 4 bytes;
        # keep under ~16 MiB so it fits v7x's smaller scoped VMEM with headroom.
        vmem_cap = max(_LANES, (((16 << 20) // (16 * D)) // _LANES) * _LANES)
        batch_tile = max(_LANES, min(512, target, vmem_cap))
    batch_tile = max(_LANES, _round_up(batch_tile, _LANES))

    B_pad = _round_up(B, batch_tile)
    # Layout plumbing: transpose to (D, B) and pad the lane axis if ragged.
    # Under jit these fuse into one relayout pass (no separate full pad copy).
    zT = jnp.transpose(z)                                               # (D, B)
    if B_pad != B:
        zT = jnp.pad(zT, ((0, 0), (0, B_pad - B)))
    grid = (B_pad // batch_tile,)

    fzT, ld = pl.pallas_call(
        _planar_flows_kernel,
        out_shape=(
            jax.ShapeDtypeStruct((D, B_pad), z.dtype),
            jax.ShapeDtypeStruct((1, B_pad), jnp.float32),
        ),
        grid=grid,
        in_specs=[
            pl.BlockSpec(memory_space=pltpu.MemorySpace.SMEM),       # b (scalars)
            pl.BlockSpec(memory_space=pltpu.MemorySpace.SMEM),       # dot(w, uhat)
            pl.BlockSpec((D, batch_tile), lambda i: (0, i)),         # zT tile
            pl.BlockSpec((D, n_flows), lambda i: (0, 0)),            # uhat^T (all flows)
            pl.BlockSpec((D, n_flows), lambda i: (0, 0)),            # w^T (all flows)
        ],
        out_specs=(
            pl.BlockSpec((D, batch_tile), lambda i: (0, i)),         # f_z^T tile
            pl.BlockSpec((1, batch_tile), lambda i: (0, i)),         # logdet row
        ),
        compiler_params=pltpu.CompilerParams(dimension_semantics=("parallel",)),
    )(b32, wu, zT, uhatT, wT)

    f_z = jnp.transpose(fzT[:, :B])                                   # (B, D)
    logdet = ld[0, :B]                                                # (B,)
    return f_z, logdet


def _reference(z, u, w, b):
    """Pure-JAX transcription of the PyTorch module, for verification."""
    ld = jnp.zeros((z.shape[0],), jnp.float32)
    for f in range(u.shape[0]):
        uf, wf, bf = u[f], w[f], b[f]
        uw = jnp.dot(uf, wf)
        muw = -1.0 + jax.nn.softplus(uw)
        uhat = uf + (muw - uw) * wf / jnp.sum(wf ** 2)
        zwb = z @ wf + bf
        t = jnp.tanh(zwb)
        z = z + uhat[None, :] * t[:, None]
        psi = (1.0 - t ** 2)[:, None] * wf[None, :]
        psi_u = psi @ uhat
        ld = ld + jnp.log(jnp.abs(1.0 + psi_u) + 1e-8)
    return z, ld


if __name__ == "__main__":
    key = jax.random.PRNGKey(0)

    # Small, ragged batch (exercises the pad path + single-tile grid).
    B, D, N_FLOWS = 12, 32, 3
    kz, *kparams = jax.random.split(key, 1 + 2 * N_FLOWS)
    z = jax.random.normal(kz, (B, D), dtype=jnp.float32)
    # PyTorch init: u, w ~ randn, b = ones(1) per flow.
    u = jnp.stack([jax.random.normal(kparams[2 * i], (D,), jnp.float32)
                   for i in range(N_FLOWS)])
    w = jnp.stack([jax.random.normal(kparams[2 * i + 1], (D,), jnp.float32)
                   for i in range(N_FLOWS)])
    b = jnp.ones((N_FLOWS,), jnp.float32)

    fwd = jax.jit(normalizing_flows_forward)

    f_z, logdet = fwd(z, u, w, b)
    jax.block_until_ready((f_z, logdet))

    ref_z, ref_ld = _reference(z, u, w, b)
    assert f_z.shape == (B, D) and logdet.shape == (B,)
    assert jnp.allclose(f_z, ref_z, atol=1e-4, rtol=1e-4)
    assert jnp.allclose(logdet, ref_ld, atol=1e-4, rtol=1e-4)

    # Larger batch (exercises multi-step grid: 2048 rows -> 8 tiles of 256 lanes).
    B2 = 2048
    z2 = jax.random.normal(jax.random.PRNGKey(1), (B2, D), dtype=jnp.float32)
    f_z2, logdet2 = fwd(z2, u, w, b)
    jax.block_until_ready((f_z2, logdet2))
    ref_z2, ref_ld2 = _reference(z2, u, w, b)
    assert jnp.allclose(f_z2, ref_z2, atol=1e-4, rtol=1e-4)
    assert jnp.allclose(logdet2, ref_ld2, atol=1e-4, rtol=1e-4)

    print("KERNEL_OK")
</pallas_src>

<mosaic_0001>
module attributes {stable_mosaic.version = 11 : i64} {
  func.func @_planar_flows_kernel(%arg0: i32, %arg1: memref<3xf32, #tpu.memory_space<smem>>, %arg2: memref<3xf32, #tpu.memory_space<smem>>, %arg3: memref<32x128xf32, #tpu.memory_space<vmem>>, %arg4: memref<32x3xf32, #tpu.memory_space<vmem>>, %arg5: memref<32x3xf32, #tpu.memory_space<vmem>>, %arg6: memref<32x128xf32, #tpu.memory_space<vmem>>, %arg7: memref<1x128xf32, #tpu.memory_space<vmem>>) attributes {dimension_semantics = [#tpu.dimension_semantics<parallel>], iteration_bounds = array<i64: 1>, scalar_prefetch = 0 : i64, scratch_operands = 0 : i64, tpu.core_type = #tpu.core_type<tc>, window_params = [{transform_indices = @transform_0, window_bounds = array<i64: 3>}, {transform_indices = @transform_1, window_bounds = array<i64: 3>}, {transform_indices = @transform_2, window_bounds = array<i64: 32, 128>}, {pipeline_mode = #tpu.pipeline_mode<synchronous>, transform_indices = @transform_3, window_bounds = array<i64: 32, 3>}, {pipeline_mode = #tpu.pipeline_mode<synchronous>, transform_indices = @transform_4, window_bounds = array<i64: 32, 3>}, {transform_indices = @transform_5, window_bounds = array<i64: 32, 128>}, {transform_indices = @transform_6, window_bounds = array<i64: 1, 128>}]} {
    %c0 = arith.constant 0 : index
    %c0_0 = arith.constant 0 : index
    %0 = vector.load %arg4[%c0, %c0_0] : memref<32x3xf32, #tpu.memory_space<vmem>>, vector<32x1xf32>
    %c0_1 = arith.constant 0 : index
    %c1 = arith.constant 1 : index
    %1 = vector.load %arg4[%c0_1, %c1] : memref<32x3xf32, #tpu.memory_space<vmem>>, vector<32x1xf32>
    %c0_2 = arith.constant 0 : index
    %c2 = arith.constant 2 : index
    %2 = vector.load %arg4[%c0_2, %c2] : memref<32x3xf32, #tpu.memory_space<vmem>>, vector<32x1xf32>
    %c0_3 = arith.constant 0 : index
    %c0_4 = arith.constant 0 : index
    %3 = vector.load %arg5[%c0_3, %c0_4] : memref<32x3xf32, #tpu.memory_space<vmem>>, vector<32x1xf32>
    %c0_5 = arith.constant 0 : index
    %c1_6 = arith.constant 1 : index
    %4 = vector.load %arg5[%c0_5, %c1_6] : memref<32x3xf32, #tpu.memory_space<vmem>>, vector<32x1xf32>
    %c0_7 = arith.constant 0 : index
    %c2_8 = arith.constant 2 : index
    %5 = vector.load %arg5[%c0_7, %c2_8] : memref<32x3xf32, #tpu.memory_space<vmem>>, vector<32x1xf32>
    %c0_9 = arith.constant 0 : index
    %6 = memref.load %arg1[%c0_9] : memref<3xf32, #tpu.memory_space<smem>>
    %c1_10 = arith.constant 1 : index
    %7 = memref.load %arg1[%c1_10] : memref<3xf32, #tpu.memory_space<smem>>
    %c2_11 = arith.constant 2 : index
    %8 = memref.load %arg1[%c2_11] : memref<3xf32, #tpu.memory_space<smem>>
    %c0_12 = arith.constant 0 : index
    %9 = memref.load %arg2[%c0_12] : memref<3xf32, #tpu.memory_space<smem>>
    %c1_13 = arith.constant 1 : index
    %10 = memref.load %arg2[%c1_13] : memref<3xf32, #tpu.memory_space<smem>>
    %c2_14 = arith.constant 2 : index
    %11 = memref.load %arg2[%c2_14] : memref<3xf32, #tpu.memory_space<smem>>
    %c0_i32 = arith.constant 0 : i32
    %c128_i32 = arith.constant 128 : i32
    %12 = arith.muli %c0_i32, %c128_i32 : i32
    %13 = tpu.assume_multiple %12, 128 : i32
    %c0_15 = arith.constant 0 : index
    %14 = arith.index_cast %13 : i32 to index
    %15 = vector.load %arg3[%c0_15, %14] : memref<32x128xf32, #tpu.memory_space<vmem>>, vector<32x128xf32>
    %cst = arith.constant 0.000000e+00 : f32
    %16 = vector.broadcast %cst : f32 to vector<1x128xf32>
    %17 = vector.broadcast %3 : vector<32x1xf32> to vector<32x128xf32>
    %18 = arith.mulf %15, %17 : vector<32x128xf32>
    %cst_16 = arith.constant dense<0.000000e+00> : vector<128xf32>
    %19 = vector.multi_reduction <add>, %18, %cst_16 [0] : vector<32x128xf32> to vector<128xf32>
    %20 = vector.shape_cast %19 : vector<128xf32> to vector<1x128xf32>
    %21 = vector.broadcast %6 : f32 to vector<1x128xf32>
    %22 = arith.addf %20, %21 : vector<1x128xf32>
    %23 = math.tanh %22 : vector<1x128xf32>
    %24 = vector.broadcast %0 : vector<32x1xf32> to vector<32x128xf32>
    %25 = vector.broadcast %23 : vector<1x128xf32> to vector<32x128xf32>
    %26 = arith.mulf %24, %25 : vector<32x128xf32>
    %27 = arith.addf %15, %26 : vector<32x128xf32>
    %28 = arith.mulf %23, %23 : vector<1x128xf32>
    %cst_17 = arith.constant 1.000000e+00 : f32
    %29 = vector.broadcast %cst_17 : f32 to vector<1x128xf32>
    %30 = arith.subf %29, %28 : vector<1x128xf32>
    %31 = vector.broadcast %9 : f32 to vector<1x128xf32>
    %32 = arith.mulf %30, %31 : vector<1x128xf32>
    %cst_18 = arith.constant 1.000000e+00 : f32
    %33 = vector.broadcast %cst_18 : f32 to vector<1x128xf32>
    %34 = arith.addf %33, %32 : vector<1x128xf32>
    %35 = math.absf %34 : vector<1x128xf32>
    %cst_19 = arith.constant 9.99999993E-9 : f32
    %36 = vector.broadcast %cst_19 : f32 to vector<1x128xf32>
    %37 = arith.addf %35, %36 : vector<1x128xf32>
    %38 = math.log %37 : vector<1x128xf32>
    %39 = arith.addf %16, %38 : vector<1x128xf32>
    %40 = vector.broadcast %4 : vector<32x1xf32> to vector<32x128xf32>
    %41 = arith.mulf %27, %40 : vector<32x128xf32>
    %cst_20 = arith.constant dense<0.000000e+00> : vector<128xf32>
    %42 = vector.multi_reduction <add>, %41, %cst_20 [0] : vector<32x128xf32> to vector<128xf32>
    %43 = vector.shape_cast %42 : vector<128xf32> to vector<1x128xf32>
    %44 = vector.broadcast %7 : f32 to vector<1x128xf32>
    %45 = arith.addf %43, %44 : vector<1x128xf32>
    %46 = math.tanh %45 : vector<1x128xf32>
    %47 = vector.broadcast %1 : vector<32x1xf32> to vector<32x128xf32>
    %48 = vector.broadcast %46 : vector<1x128xf32> to vector<32x128xf32>
    %49 = arith.mulf %47, %48 : vector<32x128xf32>
    %50 = arith.addf %27, %49 : vector<32x128xf32>
    %51 = arith.mulf %46, %46 : vector<1x128xf32>
    %cst_21 = arith.constant 1.000000e+00 : f32
    %52 = vector.broadcast %cst_21 : f32 to vector<1x128xf32>
    %53 = arith.subf %52, %51 : vector<1x128xf32>
    %54 = vector.broadcast %10 : f32 to vector<1x128xf32>
    %55 = arith.mulf %53, %54 : vector<1x128xf32>
    %cst_22 = arith.constant 1.000000e+00 : f32
    %56 = vector.broadcast %cst_22 : f32 to vector<1x128xf32>
    %57 = arith.addf %56, %55 : vector<1x128xf32>
    %58 = math.absf %57 : vector<1x128xf32>
    %cst_23 = arith.constant 9.99999993E-9 : f32
    %59 = vector.broadcast %cst_23 : f32 to vector<1x128xf32>
    %60 = arith.addf %58, %59 : vector<1x128xf32>
    %61 = math.log %60 : vector<1x128xf32>
    %62 = arith.addf %39, %61 : vector<1x128xf32>
    %63 = vector.broadcast %5 : vector<32x1xf32> to vector<32x128xf32>
    %64 = arith.mulf %50, %63 : vector<32x128xf32>
    %cst_24 = arith.constant dense<0.000000e+00> : vector<128xf32>
    %65 = vector.multi_reduction <add>, %64, %cst_24 [0] : vector<32x128xf32> to vector<128xf32>
    %66 = vector.shape_cast %65 : vector<128xf32> to vector<1x128xf32>
    %67 = vector.broadcast %8 : f32 to vector<1x128xf32>
    %68 = arith.addf %66, %67 : vector<1x128xf32>
    %69 = math.tanh %68 : vector<1x128xf32>
    %70 = vector.broadcast %2 : vector<32x1xf32> to vector<32x128xf32>
    %71 = vector.broadcast %69 : vector<1x128xf32> to vector<32x128xf32>
    %72 = arith.mulf %70, %71 : vector<32x128xf32>
    %73 = arith.addf %50, %72 : vector<32x128xf32>
    %74 = arith.mulf %69, %69 : vector<1x128xf32>
    %cst_25 = arith.constant 1.000000e+00 : f32
    %75 = vector.broadcast %cst_25 : f32 to vector<1x128xf32>
    %76 = arith.subf %75, %74 : vector<1x128xf32>
    %77 = vector.broadcast %11 : f32 to vector<1x128xf32>
    %78 = arith.mulf %76, %77 : vector<1x128xf32>
    %cst_26 = arith.constant 1.000000e+00 : f32
    %79 = vector.broadcast %cst_26 : f32 to vector<1x128xf32>
    %80 = arith.addf %79, %78 : vector<1x128xf32>
    %81 = math.absf %80 : vector<1x128xf32>
    %cst_27 = arith.constant 9.99999993E-9 : f32
    %82 = vector.broadcast %cst_27 : f32 to vector<1x128xf32>
    %83 = arith.addf %81, %82 : vector<1x128xf32>
    %84 = math.log %83 : vector<1x128xf32>
    %85 = arith.addf %62, %84 : vector<1x128xf32>
    %c0_28 = arith.constant 0 : index
    %86 = arith.index_cast %13 : i32 to index
    %87 = vector.load %arg6[%c0_28, %86] : memref<32x128xf32, #tpu.memory_space<vmem>>, vector<32x128xf32>
    tpu.vector_store %arg6[%c0_28, %86], %73 {strides = array<i32>} : memref<32x128xf32, #tpu.memory_space<vmem>>, vector<32x128xf32>,
    %c0_29 = arith.constant 0 : index
    %88 = arith.index_cast %13 : i32 to index
    %89 = vector.load %arg7[%c0_29, %88] : memref<1x128xf32, #tpu.memory_space<vmem>>, vector<1x128xf32>
    tpu.vector_store %arg7[%c0_29, %88], %85 {strides = array<i32>} : memref<1x128xf32, #tpu.memory_space<vmem>>, vector<1x128xf32>,
    %c1_i32 = arith.constant 1 : i32
    return
  }
  func.func @transform_0(%arg0: i32) -> i32 {
    %c0_i32 = arith.constant 0 : i32
    %c0_i32_0 = arith.constant 0 : i32
    return %c0_i32 : i32
  }
  func.func @transform_1(%arg0: i32) -> i32 {
    %c0_i32 = arith.constant 0 : i32
    %c0_i32_0 = arith.constant 0 : i32
    return %c0_i32 : i32
  }
  func.func @transform_2(%arg0: i32) -> (i32, i32) {
    %c0_i32 = arith.constant 0 : i32
    %c0_i32_0 = arith.constant 0 : i32
    return %c0_i32, %arg0 : i32, i32
  }
  func.func @transform_3(%arg0: i32) -> (i32, i32) {
    %c0_i32 = arith.constant 0 : i32
    %c0_i32_0 = arith.constant 0 : i32
    %c0_i32_1 = arith.constant 0 : i32
    return %c0_i32, %c0_i32_0 : i32, i32
  }
  func.func @transform_4(%arg0: i32) -> (i32, i32) {
    %c0_i32 = arith.constant 0 : i32
    %c0_i32_0 = arith.constant 0 : i32
    %c0_i32_1 = arith.constant 0 : i32
    return %c0_i32, %c0_i32_0 : i32, i32
  }
  func.func @transform_5(%arg0: i32) -> (i32, i32) {
    %c0_i32 = arith.constant 0 : i32
    %c0_i32_0 = arith.constant 0 : i32
    return %c0_i32, %arg0 : i32, i32
  }
  func.func @transform_6(%arg0: i32) -> (i32, i32) {
    %c0_i32 = arith.constant 0 : i32
    %c0_i32_0 = arith.constant 0 : i32
    return %c0_i32, %arg0 : i32, i32
  }
}

</mosaic_0001>

<llo_original>
// kernel: normalizing_flows_forward.1
$region0: #{normalizing_flows_forward.1}
  #allocation0 [shape = 'u32[]', space=smem, size = 0x4, offset = 0x4, fixed_abs, tag = 'smem constant byte address 0x4 - core index']
  #allocation1 [shape = 'u32[144,128]{1,0:T(1,128)}', space=vmem, size = 0x12000, scoped, tag = 'internal scratch']
  %s0 = inlined_call_operand.vmem [shape: f32[3], index: 0, kind: input, shape index: {}]
  %s1 = inlined_call_operand.vmem [shape: f32[3], index: 1, kind: input, shape index: {}]
  %s2 = inlined_call_operand.vmem [shape: f32[32,128], index: 2, kind: input, shape index: {}]
  %s3 = inlined_call_operand.vmem [shape: f32[32,3], index: 3, kind: input, shape index: {}]
  %s4 = inlined_call_operand.vmem [shape: f32[32,3], index: 4, kind: input, shape index: {}]
  %s5 = inlined_call_operand.vmem [shape: f32[32,128], index: 5, kind: output, shape index: {0}]
  %s6 = inlined_call_operand.vmem [shape: f32[1,128], index: 6, kind: output, shape index: {1}]
  %7 = xla_tuple %s5, %s6
  %s8 = sld [smem:[#allocation0]]
  $region46: #{normalizing_flows_forward.1} parent=0
    _
  %s10 = ssub.s32 1, %s8
  %s11 = scalar_select 0, %s10, %s8
  $region1: #{normalizing_flows_forward.1} parent=0
    #allocation2 [shape = 'u8[512]{0}', space=smem, size = 0x200, scoped, tag = 'input window, operand 0, single buffered']
    #allocation3 [shape = 's32[1]{0}', space=sflag, size = 0x4, scoped, tag = 'scoped memory for normalizing_flows_forward.1']
    #allocation4 [shape = 'u8[512]{0}', space=smem, size = 0x200, scoped, tag = 'input window, operand 1, single buffered']
    #allocation5 [shape = 's32[1]{0}', space=sflag, size = 0x4, scoped, tag = 'scoped memory for normalizing_flows_forward.1']
    %12 = vsyncpa [#allocation3], 0
    %13 = vsyncpa [#allocation5], 0
    // Predicated region
    $region2: #{normalizing_flows_forward.1} parent=1 // pred_check
      _
    $region3: #{normalizing_flows_forward.1} parent=1 // pred_check_branch
      %15 = sbr.rel (0) target = $region5
    $region4: #{normalizing_flows_forward.1} parent=1 // pred_region
      %s17 = ssub.s32 16, 16
      %18 = vsyncadd [#allocation3], %s17
      %s20 = sshll.u32 %s0, 4
      %s21 = int_to_ptr.vmem [resolvable:$true] %s20
      %23 = dma.vmem_to_smem %s21, 16, [#allocation2], [#allocation3]
    $region5: #{normalizing_flows_forward.1} parent=1 // pred_fallthru
      _
    // Predicated region
    $region6: #{normalizing_flows_forward.1} parent=1 // pred_check
      _
    $region7: #{normalizing_flows_forward.1} parent=1 // pred_check_branch
      %25 = sbr.rel (0) target = $region9
    $region8: #{normalizing_flows_forward.1} parent=1 // pred_region
      %s27 = ssub.s32 16, 16
      %28 = vsyncadd [#allocation5], %s27
      %s30 = sshll.u32 %s1, 4
      %s31 = int_to_ptr.vmem [resolvable:$true] %s30
      %33 = dma.vmem_to_smem %s31, 16, [#allocation4], [#allocation5]
    $region9: #{normalizing_flows_forward.1} parent=1 // pred_fallthru
      _
    // Predicated region
    $region10: #{normalizing_flows_forward.1} parent=1 // pred_check
      _
    $region11: #{normalizing_flows_forward.1} parent=1 // pred_check_branch
      %35 = sbr.rel (0) target = $region13
    $region12: #{normalizing_flows_forward.1} parent=1 // pred_region
      _
    $region13: #{normalizing_flows_forward.1} parent=1 // pred_fallthru
      _
    // Predicated region
    $region14: #{normalizing_flows_forward.1} parent=1 // pred_check
      _
    $region15: #{normalizing_flows_forward.1} parent=1 // pred_check_branch
      %37 = sbr.rel (0) target = $region17
    $region16: #{normalizing_flows_forward.1} parent=1 // pred_region
      _
    $region17: #{normalizing_flows_forward.1} parent=1 // pred_fallthru
      _
    // Predicated region
    $region18: #{normalizing_flows_forward.1} parent=1 // pred_check
      _
    $region19: #{normalizing_flows_forward.1} parent=1 // pred_check_branch
      %39 = sbr.rel (0) target = $region21
    $region20: #{normalizing_flows_forward.1} parent=1 // pred_region
      _
    $region21: #{normalizing_flows_forward.1} parent=1 // pred_fallthru
      _
    // Predicated region
    $region22: #{normalizing_flows_forward.1} parent=1 // pred_check
      _
    $region23: #{normalizing_flows_forward.1} parent=1 // pred_check_branch
      %41 = sbr.rel (0) target = $region25
    $region24: #{normalizing_flows_forward.1} parent=1 // pred_region
      %42 = dma.done [#allocation3], 16
    $region25: #{normalizing_flows_forward.1} parent=1 // pred_fallthru
      _
    // Predicated region
    $region26: #{normalizing_flows_forward.1} parent=1 // pred_check
      _
    $region27: #{normalizing_flows_forward.1} parent=1 // pred_check_branch
      %44 = sbr.rel (0) target = $region29
    $region28: #{normalizing_flows_forward.1} parent=1 // pred_region
      %45 = dma.done [#allocation5], 16
    $region29: #{normalizing_flows_forward.1} parent=1 // pred_fallthru
      _
    %46 = sfence
    %v47 = vld [vmem:[%s3] sm:$0xff]
    %v48 = vld [vmem:[%s3 + $0x8] sm:$0xff]
    %v49 = vld [vmem:[%s3 + $0x10] sm:$0xff]
    %v50 = vld [vmem:[%s3 + $0x18] sm:$0xff]
    %v51 = vld [vmem:[%s4] sm:$0xff]
    %v52 = vld [vmem:[%s4 + $0x8] sm:$0xff]
    %v53 = vld [vmem:[%s4 + $0x10] sm:$0xff]
    %v54 = vld [vmem:[%s4 + $0x18] sm:$0xff]
    %s55 = sld [smem:[#allocation2]]
    %s56 = sld [smem:[#allocation2 + $0x1]]
    %s57 = sld [smem:[#allocation2 + $0x2]]
    %s58 = sld [smem:[#allocation4]]
    %s59 = sld [smem:[#allocation4 + $0x1]]
    %s60 = sld [smem:[#allocation4 + $0x2]]
    %v61 = vld [vmem:[%s2] sm:$0xff]
    %v62 = vld [vmem:[%s2 + $0x8] sm:$0xff]
    %v63 = vld [vmem:[%s2 + $0x10] sm:$0xff]
    %v64 = vld [vmem:[%s2 + $0x18] sm:$0xff]
    %66 = vset.pattern.permute.xlu0 0
    %67 = vperm.xlu0 %66, %v51
    %v68 = vpop.permute.xlu0 %67
    %71 = vset.pattern.permute.xlu0 0
    %72 = vperm.xlu0 %71, %v52
    %v73 = vpop.permute.xlu0 %72
    %76 = vset.pattern.permute.xlu0 0
    %77 = vperm.xlu0 %76, %v53
    %v78 = vpop.permute.xlu0 %77
    %81 = vset.pattern.permute.xlu0 0
    %82 = vperm.xlu0 %81, %v54
    %v83 = vpop.permute.xlu0 %82
    %v85 = vmul.f32 %v61, %v68
    %v86 = vmul.f32 %v62, %v73
    %v87 = vmul.f32 %v63, %v78
    %v88 = vmul.f32 %v64, %v83
    %v89 = vadd.f32 %v85, %v86
    %v90 = vadd.f32 %v89, %v87
    %v91 = vadd.f32 %v90, %v88
    %v92 = vrot.slane %v91, 4
    %v93 = vadd.f32 %v91, %v92
    %v94 = vrot.slane %v93, 2
    %v95 = vadd.f32 %v93, %v94
    %v96 = vrot.slane %v95, 1
    %v97 = vadd.f32 %v95, %v96
    %v98 = vstv %s55
    %v99 = vadd.f32 %v97, %v98
    %v100 = vtanh.pop %v99
    %102 = vset.pattern.permute.xlu0 0
    %103 = vperm.xlu0 %102, %v47
    %v104 = vpop.permute.xlu0 %103
    %107 = vset.pattern.permute.xlu0 0
    %108 = vperm.xlu0 %107, %v48
    %v109 = vpop.permute.xlu0 %108
    %112 = vset.pattern.permute.xlu0 0
    %113 = vperm.xlu0 %112, %v49
    %v114 = vpop.permute.xlu0 %113
    %117 = vset.pattern.permute.xlu0 0
    %118 = vperm.xlu0 %117, %v50
    %v119 = vpop.permute.xlu0 %118
    %v121 = vmul.f32 %v104, %v100
    %v122 = vmul.f32 %v109, %v100
    %v123 = vmul.f32 %v114, %v100
    %v124 = vmul.f32 %v119, %v100
    %v125 = vadd.f32 %v61, %v121
    %v126 = vadd.f32 %v62, %v122
    %v127 = vadd.f32 %v63, %v123
    %v128 = vadd.f32 %v64, %v124
    %v129 = vmul.f32 %v100, %v100
    %v130 = vsub.f32 1.0, %v129
    %v131 = vstv %s58
    %v132 = vmul.f32 %v130, %v131
    %v133 = vadd.f32 %v132, 1.0
    %v134 = vand.u32 2147483647, %v133
    %v135 = vadd.f32 %v134, 1e-08
    %v136 = vlog2.pop %v135
    %v137 = vmul.f32 %v136, 0.6931472
    %v138 = vadd.f32 %v137, 0.0
    %139 = vset.pattern.permute.xlu0 1
    %140 = vperm.xlu0 %139, %v51
    %v141 = vpop.permute.xlu0 %140
    %143 = vset.pattern.permute.xlu0 1
    %144 = vperm.xlu0 %143, %v52
    %v145 = vpop.permute.xlu0 %144
    %147 = vset.pattern.permute.xlu0 1
    %148 = vperm.xlu0 %147, %v53
    %v149 = vpop.permute.xlu0 %148
    %151 = vset.pattern.permute.xlu0 1
    %152 = vperm.xlu0 %151, %v54
    %v153 = vpop.permute.xlu0 %152
    %v155 = vmul.f32 %v125, %v141
    %v156 = vmul.f32 %v126, %v145
    %v157 = vmul.f32 %v127, %v149
    %v158 = vmul.f32 %v128, %v153
    %v159 = vadd.f32 %v155, %v156
    %v160 = vadd.f32 %v159, %v157
    %v161 = vadd.f32 %v160, %v158
    %v162 = vrot.slane %v161, 4
    %v163 = vadd.f32 %v161, %v162
    %v164 = vrot.slane %v163, 2
    %v165 = vadd.f32 %v163, %v164
    %v166 = vrot.slane %v165, 1
    %v167 = vadd.f32 %v165, %v166
    %v168 = vstv %s56
    %v169 = vadd.f32 %v167, %v168
    %v170 = vtanh.pop %v169
    %171 = vset.pattern.permute.xlu0 1
    %172 = vperm.xlu0 %171, %v47
    %v173 = vpop.permute.xlu0 %172
    %175 = vset.pattern.permute.xlu0 1
    %176 = vperm.xlu0 %175, %v48
    %v177 = vpop.permute.xlu0 %176
    %179 = vset.pattern.permute.xlu0 1
    %180 = vperm.xlu0 %179, %v49
    %v181 = vpop.permute.xlu0 %180
    %183 = vset.pattern.permute.xlu0 1
    %184 = vperm.xlu0 %183, %v50
    %v185 = vpop.permute.xlu0 %184
    %v187 = vmul.f32 %v173, %v170
    %v188 = vmul.f32 %v177, %v170
    %v189 = vmul.f32 %v181, %v170
    %v190 = vmul.f32 %v185, %v170
    %v191 = vadd.f32 %v125, %v187
    %v192 = vadd.f32 %v126, %v188
    %v193 = vadd.f32 %v127, %v189
    %v194 = vadd.f32 %v128, %v190
    %v195 = vmul.f32 %v170, %v170
    %v196 = vsub.f32 1.0, %v195
    %v197 = vstv %s59
    %v198 = vmul.f32 %v196, %v197
    %v199 = vadd.f32 %v198, 1.0
    %v200 = vand.u32 2147483647, %v199
    %v201 = vadd.f32 %v200, 1e-08
    %v202 = vlog2.pop %v201
    %v203 = vmul.f32 %v202, 0.6931472
    %v204 = vadd.f32 %v138, %v203
    %205 = vset.pattern.permute.xlu0 2
    %206 = vperm.xlu0 %205, %v51
    %v207 = vpop.permute.xlu0 %206
    %209 = vset.pattern.permute.xlu0 2
    %210 = vperm.xlu0 %209, %v52
    %v211 = vpop.permute.xlu0 %210
    %213 = vset.pattern.permute.xlu0 2
    %214 = vperm.xlu0 %213, %v53
    %v215 = vpop.permute.xlu0 %214
    %217 = vset.pattern.permute.xlu0 2
    %218 = vperm.xlu0 %217, %v54
    %v219 = vpop.permute.xlu0 %218
    %v221 = vmul.f32 %v191, %v207
    %v222 = vmul.f32 %v192, %v211
    %v223 = vmul.f32 %v193, %v215
    %v224 = vmul.f32 %v194, %v219
    %v225 = vadd.f32 %v221, %v222
    %v226 = vadd.f32 %v225, %v223
    %v227 = vadd.f32 %v226, %v224
    %v228 = vrot.slane %v227, 4
    %v229 = vadd.f32 %v227, %v228
    %v230 = vrot.slane %v229, 2
    %v231 = vadd.f32 %v229, %v230
    %v232 = vrot.slane %v231, 1
    %v233 = vadd.f32 %v231, %v232
    %v234 = vstv %s57
    %v235 = vadd.f32 %v233, %v234
    %v236 = vtanh.pop %v235
    %237 = vset.pattern.permute.xlu0 2
    %238 = vperm.xlu0 %237, %v47
    %v239 = vpop.permute.xlu0 %238
    %241 = vset.pattern.permute.xlu0 2
    %242 = vperm.xlu0 %241, %v48
    %v243 = vpop.permute.xlu0 %242
    %245 = vset.pattern.permute.xlu0 2
    %246 = vperm.xlu0 %245, %v49
    %v247 = vpop.permute.xlu0 %246
    %249 = vset.pattern.permute.xlu0 2
    %250 = vperm.xlu0 %249, %v50
    %v251 = vpop.permute.xlu0 %250
    %v253 = vmul.f32 %v239, %v236
    %v254 = vmul.f32 %v243, %v236
    %v255 = vmul.f32 %v247, %v236
    %v256 = vmul.f32 %v251, %v236
    %v257 = vadd.f32 %v191, %v253
    %v258 = vadd.f32 %v192, %v254
    %v259 = vadd.f32 %v193, %v255
    %v260 = vadd.f32 %v194, %v256
    %v261 = vmul.f32 %v236, %v236
    %v262 = vsub.f32 1.0, %v261
    %v263 = vstv %s60
    %v264 = vmul.f32 %v262, %v263
    %v265 = vadd.f32 %v264, 1.0
    %v266 = vand.u32 2147483647, %v265
    %v267 = vadd.f32 %v266, 1e-08
    %v268 = vlog2.pop %v267
    %v269 = vmul.f32 %v268, 0.6931472
    %v270 = vadd.f32 %v204, %v269
    %271 = vst [vmem:[%s5] sm:$0xff] %v257
    %272 = vst [vmem:[%s5 + $0x8] sm:$0xff] %v258
    %273 = vst [vmem:[%s5 + $0x10] sm:$0xff] %v259
    %274 = vst [vmem:[%s5 + $0x18] sm:$0xff] %v260
    %275 = vst [vmem:[%s6] sm:$0x1] %v270
    // Predicated region
    $region30: #{normalizing_flows_forward.1} parent=1 // pred_check
      _
    $region31: #{normalizing_flows_forward.1} parent=1 // pred_check_branch
      %277 = sbr.rel (0) target = $region33
    $region32: #{normalizing_flows_forward.1} parent=1 // pred_region
      _
    $region33: #{normalizing_flows_forward.1} parent=1 // pred_fallthru
      _
    // Predicated region
    $region34: #{normalizing_flows_forward.1} parent=1 // pred_check
      _
    $region35: #{normalizing_flows_forward.1} parent=1 // pred_check_branch
      %279 = sbr.rel (0) target = $region37
    $region36: #{normalizing_flows_forward.1} parent=1 // pred_region
      _
    $region37: #{normalizing_flows_forward.1} parent=1 // pred_fallthru
      _
    // Predicated region
    $region38: #{normalizing_flows_forward.1} parent=1 // pred_check
      _
    $region39: #{normalizing_flows_forward.1} parent=1 // pred_check_branch
      %281 = sbr.rel (0) target = $region41
    $region40: #{normalizing_flows_forward.1} parent=1 // pred_region
      _
    $region41: #{normalizing_flows_forward.1} parent=1 // pred_fallthru
      _
    // Predicated region
    $region42: #{normalizing_flows_forward.1} parent=1 // pred_check
      _
    $region43: #{normalizing_flows_forward.1} parent=1 // pred_check_branch
      %283 = sbr.rel (0) target = $region45
    $region44: #{normalizing_flows_forward.1} parent=1 // pred_region
      _
    $region45: #{normalizing_flows_forward.1} parent=1 // pred_fallthru
      _
    %284 = vsyncpa [#allocation3], 1
    %285 = vsyncpa [#allocation5], 1

</llo_original>
